<compile_context>
chip_gen: v7x
topology: tpu7x:2x2x1
jax: 0.10.0
libtpu: 0.0.40
codegen_flags: <defaults>
</compile_context>

<pallas_src>
import numpy as np
import jax
import jax.numpy as jnp
from jax.experimental import pallas as pl
from jax.experimental.pallas import tpu as pltpu

# ----------------------------- configuration (small shapes) ------------------
B = 2                         # batch
C_IMG, H_IMG, W_IMG = 4, 16, 16
SEQ = 8
VOCAB = 100
TEXT_DIM = 64                 # stand-in for 768 (BERT hidden)
VISION_DIM = 64               # stand-in for 1280 (EfficientNet-B0 features)
BIO_DIM = 16                  # biomarker_dim
HID = 32                      # hidden_dim
NUM_CLASSES = 4
BIO_OUT = 64                  # biomarker encoder output (fixed to 64 in module)
FUSION_IN = HID + HID + BIO_OUT          # 32 + 32 + 64 = 128
FEAT_DIM = HID // 4                      # 8
BN_EPS = 1e-5

# ----------------------------- fused-stage layout ----------------------------
X_W = 128        # packed input lanes: [pooled 0:64 | gap 64:68 | bio 68:84 | 0]
OUT_W = 128      # packed output lanes: [feats 0:8 | logits 8:12 | 0]

W1_ROWS, W1_COLS = 432, 160   # stages A-C slab (bf16)
W2_ROWS, W2_COLS = 192, 128   # stages D-G slab (bf16), rows padded 184 -> 192
BIAS_ROWS, BIAS_W = 8, 160    # per-stage bias slab (f32), biases at column 0

# Stage table: (slab_id, row0, in_dim, out_dim, bias_row)
#   A: text pooler(64->64,tanh) | vision stem(4->64) | bio L1(16->32,relu)
#   B: text L1(64->64) | vision L1(64->64) | bio L2(32->16)        (all relu)
#   C: text L2(64->32) | vision L2(64->32) | bio L3(16->64)  (relu | relu | id)
#   D/E/F: fusion 128->32->16->8 (relu, relu, id)
#   G: [I_8 | classification head 8->4] padded to 128 lanes (lane-dense store)
STAGE_A = (1, 0,   128, 160, 0)
STAGE_B = (1, 128, 160, 144, 1)
STAGE_C = (1, 288, 144, 128, 2)
STAGE_D = (2, 0,   128, 32,  3)
STAGE_E = (2, 128, 32,  16,  4)
STAGE_F = (2, 160, 16,  8,   5)
STAGE_G = (2, 176, 8,   128, 6)


def _round_up(n, m):
    return (n + m - 1) // m * m


# ----------------------------- Pallas kernel ---------------------------------
def vlm_fused_kernel(x_ref, w1_ref, w2_ref, b_ref, out_ref):
    """Whole CustomMedicalVLM head: 7 chained block-diagonal bf16 matmuls."""
    bias = b_ref[...]                                   # (8, 160) f32, one load
    relu = lambda t: jnp.maximum(t, 0.0)

    def stage(a, spec):
        slab, row0, in_dim, out_dim, brow = spec
        w_ref = w1_ref if slab == 1 else w2_ref
        w = w_ref[row0:row0 + in_dim, :out_dim]          # bf16 static view
        acc = jnp.dot(a.astype(jnp.bfloat16), w,
                      preferred_element_type=jnp.float32)
        return acc + bias[brow:brow + 1, :out_dim]

    x = x_ref[...]                                       # (TM, 128) f32

    # Stage A: tanh (text pooler, lanes<64) | identity (vision stem, 64..127)
    #          | relu (bio L1, BN folded, 128..159)
    a = stage(x, STAGE_A)                                # (TM, 160)
    lane_a = jax.lax.broadcasted_iota(jnp.int32, a.shape, 1)
    a = jnp.where(lane_a < TEXT_DIM, jnp.tanh(a),
                  jnp.where(lane_a < TEXT_DIM + VISION_DIM, a, relu(a)))

    # Stage B: text L1 | vision L1 | bio L2 — all ReLU.
    a = relu(stage(a, STAGE_B))                          # (TM, 144)

    # Stage C: text L2 / vision L2 -> ReLU (lanes < 64); bio L3 -> identity.
    a = stage(a, STAGE_C)                                # (TM, 128)
    lane_c = jax.lax.broadcasted_iota(jnp.int32, a.shape, 1)
    a = jnp.where(lane_c < 2 * HID, relu(a), a)

    # Lanes [0:128) are now exactly torch.cat([text, vision, bio], dim=1).
    a = relu(stage(a, STAGE_D))                          # fusion L1 (+BN folded)
    a = relu(stage(a, STAGE_E))                          # fusion L2 (+BN folded)
    a = stage(a, STAGE_F)                                # fusion L3 -> feats (8)
    a = stage(a, STAGE_G)                                # [feats | logits | 0]
    out_ref[...] = a                                     # lane-dense (TM, 128)


# ----------------------------- jitted forward --------------------------------
@jax.jit
def _vlm_forward_jit(w1, w2, b_slab, tok_emb, image, biomarkers, input_ids,
                     attention_mask):
    # TODO(synk): pretrained Bio_ClinicalBERT not reproducible; embedding gather
    # + masked mean stand-in kept as XLA glue (no clean Pallas gather at this
    # size).
    emb = tok_emb[input_ids]                                      # (B, S, TEXT)
    m = attention_mask[..., None].astype(jnp.float32)
    pooled = (emb * m).sum(axis=1) / jnp.maximum(m.sum(axis=1), 1.0)

    # TODO(synk): pretrained EfficientNet-B0 not reproducible; GAP stand-in.
    gap = image.mean(axis=(2, 3))                                 # (B, C_IMG)

    # Pack dense activations into one lane-dense (B, 128) slab.
    nb = pooled.shape[0]
    pad = jnp.zeros((nb, X_W - TEXT_DIM - C_IMG - BIO_DIM), jnp.float32)
    x = jnp.concatenate(
        [pooled.astype(jnp.float32), gap.astype(jnp.float32),
         biomarkers.astype(jnp.float32), pad], axis=1)            # (B, 128)

    # Row-block grid: weights/bias resident (constant index_map), activations
    # and outputs tiled (TM, 128); parallel axis -> both v7x TensorCores.
    tm = min(256, _round_up(nb, 8))
    nb_pad = _round_up(nb, tm)
    if nb_pad != nb:
        x = jnp.pad(x, ((0, nb_pad - nb), (0, 0)))

    out = pl.pallas_call(
        vlm_fused_kernel,
        out_shape=jax.ShapeDtypeStruct((nb_pad, OUT_W), jnp.float32),
        grid=(nb_pad // tm,),
        in_specs=[
            pl.BlockSpec((tm, X_W), lambda i: (i, 0)),
            pl.BlockSpec((W1_ROWS, W1_COLS), lambda i: (0, 0)),
            pl.BlockSpec((W2_ROWS, W2_COLS), lambda i: (0, 0)),
            pl.BlockSpec((BIAS_ROWS, BIAS_W), lambda i: (0, 0)),
        ],
        out_specs=pl.BlockSpec((tm, OUT_W), lambda i: (i, 0)),
        compiler_params=pltpu.CompilerParams(
            dimension_semantics=("parallel",)),
    )(x, w1, w2, b_slab)

    out = out[:nb]
    feats = out[:, :FEAT_DIM]
    logits = out[:, FEAT_DIM:FEAT_DIM + NUM_CLASSES]
    return logits, feats


def vlm_forward(params, packed, image, biomarkers, input_ids, attention_mask,
                return_features=False):
    w1, w2, b_slab = packed
    logits, feats = _vlm_forward_jit(w1, w2, b_slab, params["tok_emb"], image,
                                     biomarkers, input_ids, attention_mask)
    return (logits, feats) if return_features else logits


# ----------------------------- parameter construction ------------------------
def _linear_init(key, fan_in, fan_out):
    kw, kb = jax.random.split(key)
    bound = 1.0 / jnp.sqrt(float(fan_in))
    w = jax.random.uniform(kw, (fan_in, fan_out), jnp.float32, -bound, bound)
    b = jax.random.uniform(kb, (1, fan_out), jnp.float32, -bound, bound)
    return w, b


def _fold_bn(w, b, gamma, beta, mean, var, eps=BN_EPS):
    """Fold an eval-mode BatchNorm1d that directly follows a Linear into it."""
    s = gamma / jnp.sqrt(var + eps)
    return w * s[None, :], b * s[None, :] + (beta - mean * s)[None, :]


def _rand_bn(key, dim):
    kg, kb, km, kv = jax.random.split(key, 4)
    gamma = 1.0 + 0.1 * jax.random.normal(kg, (dim,), jnp.float32)
    beta = 0.1 * jax.random.normal(kb, (dim,), jnp.float32)
    mean = 0.1 * jax.random.normal(km, (dim,), jnp.float32)
    var = jax.random.uniform(kv, (dim,), jnp.float32, 0.5, 1.5)
    return gamma, beta, mean, var


def make_params(key):
    keys = jax.random.split(key, 20)
    p = {}

    # stand-in encoders (glue, not part of the module's own layers)
    p["tok_emb"] = 0.02 * jax.random.normal(keys[0], (VOCAB, TEXT_DIM),
                                            jnp.float32)
    p["pool_w"], p["pool_b"] = _linear_init(keys[1], TEXT_DIM, TEXT_DIM)
    p["vis_stem_w"], p["vis_stem_b"] = _linear_init(keys[2], C_IMG, VISION_DIM)

    # text_projector: Linear -> ReLU -> Drop -> Linear -> BN -> ReLU -> Drop
    p["t_w1"], p["t_b1"] = _linear_init(keys[3], TEXT_DIM, 2 * HID)
    w, b = _linear_init(keys[4], 2 * HID, HID)
    p["t_w2"], p["t_b2"] = _fold_bn(w, b, *_rand_bn(keys[5], HID))

    # vision_projector: same structure
    p["v_w1"], p["v_b1"] = _linear_init(keys[6], VISION_DIM, 2 * HID)
    w, b = _linear_init(keys[7], 2 * HID, HID)
    p["v_w2"], p["v_b2"] = _fold_bn(w, b, *_rand_bn(keys[8], HID))

    # biomarker_encoder: Lin->BN->ReLU->Drop->Lin->BN->ReLU->Drop->Lin
    w, b = _linear_init(keys[9], BIO_DIM, HID)
    p["b_w1"], p["b_b1"] = _fold_bn(w, b, *_rand_bn(keys[10], HID))
    w, b = _linear_init(keys[11], HID, HID // 2)
    p["b_w2"], p["b_b2"] = _fold_bn(w, b, *_rand_bn(keys[12], HID // 2))
    p["b_w3"], p["b_b3"] = _linear_init(keys[13], HID // 2, BIO_OUT)

    # fusion_layer: Lin->BN->ReLU->Drop->Lin->BN->ReLU->Drop->Lin
    w, b = _linear_init(keys[14], FUSION_IN, HID)
    p["f_w1"], p["f_b1"] = _fold_bn(w, b, *_rand_bn(keys[15], HID))
    w, b = _linear_init(keys[16], HID, HID // 2)
    p["f_w2"], p["f_b2"] = _fold_bn(w, b, *_rand_bn(keys[17], HID // 2))
    p["f_w3"], p["f_b3"] = _linear_init(keys[18], HID // 2, HID // 4)

    # classification_head
    p["c_w"], p["c_b"] = _linear_init(keys[19], HID // 4, NUM_CLASSES)
    return p


# ----------------------------- host-side slab packing ------------------------
def pack_fused_params(p):
    """Pack all (BN-folded) weights into two tight bf16 slabs + one f32 bias slab."""
    W1 = np.zeros((W1_ROWS, W1_COLS), np.float32)
    W2 = np.zeros((W2_ROWS, W2_COLS), np.float32)
    Bb = np.zeros((BIAS_ROWS, BIAS_W), np.float32)

    def put(W, r0, c0, w):
        w = np.asarray(w, np.float32)
        W[r0:r0 + w.shape[0], c0:c0 + w.shape[1]] = w

    def putb(row, c0, b):
        b = np.asarray(b, np.float32).reshape(-1)
        Bb[row, c0:c0 + b.shape[0]] = b

    # Stage A (W1 rows 0..127) — input lanes: pooled 0:64 | gap 64:68 | bio 68:84
    put(W1, 0, 0, p["pool_w"]);       putb(0, 0, p["pool_b"])
    put(W1, 64, 64, p["vis_stem_w"]); putb(0, 64, p["vis_stem_b"])
    put(W1, 68, 128, p["b_w1"]);      putb(0, 128, p["b_b1"])
    # Stage B (W1 rows 128..287) — input lanes: text 0:64 | vision 64:128 | bio 128:160
    put(W1, 128, 0, p["t_w1"]);       putb(1, 0, p["t_b1"])
    put(W1, 192, 64, p["v_w1"]);      putb(1, 64, p["v_b1"])
    put(W1, 256, 128, p["b_w2"]);     putb(1, 128, p["b_b2"])
    # Stage C (W1 rows 288..431) — input lanes: text 0:64 | vision 64:128 | bio 128:144
    put(W1, 288, 0, p["t_w2"]);       putb(2, 0, p["t_b2"])
    put(W1, 352, 32, p["v_w2"]);      putb(2, 32, p["v_b2"])
    put(W1, 416, 64, p["b_w3"]);      putb(2, 64, p["b_b3"])
    # Stages D/E/F (W2) — fusion layer
    put(W2, 0, 0, p["f_w1"]);         putb(3, 0, p["f_b1"])
    put(W2, 128, 0, p["f_w2"]);       putb(4, 0, p["f_b2"])
    put(W2, 160, 0, p["f_w3"]);       putb(5, 0, p["f_b3"])
    # Stage G (W2 rows 176..183) — identity pass-through of feats + class head
    put(W2, 176, 0, np.eye(FEAT_DIM, dtype=np.float32))
    put(W2, 176, FEAT_DIM, p["c_w"]); putb(6, FEAT_DIM, p["c_b"])

    return (jnp.asarray(W1).astype(jnp.bfloat16),
            jnp.asarray(W2).astype(jnp.bfloat16),
            jnp.asarray(Bb, dtype=jnp.float32))


# ----------------------------- pure-JAX reference ----------------------------
def vlm_reference(p, image, biomarkers, input_ids, attention_mask):
    """Unfused eval-mode forward (BN folded) mirroring the kernel's bf16 math."""
    hi = jax.lax.Precision.HIGHEST
    bf = lambda t: t.astype(jnp.bfloat16).astype(jnp.float32)
    lin = lambda x, w, b: jnp.dot(bf(x), bf(w), precision=hi) + b
    relu = lambda t: jnp.maximum(t, 0.0)

    emb = p["tok_emb"][input_ids]
    m = attention_mask[..., None].astype(jnp.float32)
    pooled = (emb * m).sum(axis=1) / jnp.maximum(m.sum(axis=1), 1.0)
    text_feat = jnp.tanh(lin(pooled, p["pool_w"], p["pool_b"]))
    vis_feat = lin(image.mean(axis=(2, 3)), p["vis_stem_w"], p["vis_stem_b"])

    t = relu(lin(text_feat, p["t_w1"], p["t_b1"]))
    t = relu(lin(t, p["t_w2"], p["t_b2"]))
    v = relu(lin(vis_feat, p["v_w1"], p["v_b1"]))
    v = relu(lin(v, p["v_w2"], p["v_b2"]))
    bm = relu(lin(biomarkers, p["b_w1"], p["b_b1"]))
    bm = relu(lin(bm, p["b_w2"], p["b_b2"]))
    bm = lin(bm, p["b_w3"], p["b_b3"])

    fused = jnp.concatenate([t, v, bm], axis=1)
    f = relu(lin(fused, p["f_w1"], p["f_b1"]))
    f = relu(lin(f, p["f_w2"], p["f_b2"]))
    f = lin(f, p["f_w3"], p["f_b3"])
    logits = lin(f, p["c_w"], p["c_b"])
    return logits, f


# ----------------------------- demo ------------------------------------------
if __name__ == "__main__":
    root = jax.random.PRNGKey(0)
    k_param, k_img, k_bio, k_ids = jax.random.split(root, 4)

    params = make_params(k_param)
    packed = pack_fused_params(params)

    image = jax.random.normal(k_img, (B, C_IMG, H_IMG, W_IMG), jnp.float32)
    biomarkers = jax.random.normal(k_bio, (B, BIO_DIM), jnp.float32)
    input_ids = jax.random.randint(k_ids, (B, SEQ), 0, VOCAB)
    attention_mask = jnp.ones((B, SEQ), jnp.int32)

    logits, feats = vlm_forward(params, packed, image, biomarkers, input_ids,
                                attention_mask, return_features=True)
    jax.block_until_ready((logits, feats))

    # Guard against packing / structural errors (reference uses the same
    # bf16-rounded weights the kernel consumes).
    ref_logits, ref_feats = vlm_reference(params, image, biomarkers, input_ids,
                                          attention_mask)
    np.testing.assert_allclose(np.asarray(logits), np.asarray(ref_logits),
                               rtol=5e-2, atol=5e-2)
    np.testing.assert_allclose(np.asarray(feats), np.asarray(ref_feats),
                               rtol=5e-2, atol=5e-2)

    assert logits.shape == (B, NUM_CLASSES)
    assert feats.shape == (B, FEAT_DIM)
    print("KERNEL_OK")
</pallas_src>

<mosaic_0001>
module attributes {stable_mosaic.version = 11 : i64} {
  func.func @vlm_fused_kernel(%arg0: i32, %arg1: memref<8x128xf32, #tpu.memory_space<vmem>>, %arg2: memref<432x160xbf16, #tpu.memory_space<vmem>>, %arg3: memref<192x128xbf16, #tpu.memory_space<vmem>>, %arg4: memref<8x160xf32, #tpu.memory_space<vmem>>, %arg5: memref<8x128xf32, #tpu.memory_space<vmem>>) attributes {dimension_semantics = [#tpu.dimension_semantics<parallel>], iteration_bounds = array<i64: 1>, scalar_prefetch = 0 : i64, scratch_operands = 0 : i64, tpu.core_type = #tpu.core_type<tc>, window_params = [{transform_indices = @transform_0, window_bounds = array<i64: 8, 128>}, {pipeline_mode = #tpu.pipeline_mode<synchronous>, transform_indices = @transform_1, window_bounds = array<i64: 432, 160>}, {pipeline_mode = #tpu.pipeline_mode<synchronous>, transform_indices = @transform_2, window_bounds = array<i64: 192, 128>}, {pipeline_mode = #tpu.pipeline_mode<synchronous>, transform_indices = @transform_3, window_bounds = array<i64: 8, 160>}, {transform_indices = @transform_4, window_bounds = array<i64: 8, 128>}]} {
    %c0 = arith.constant 0 : index
    %c0_0 = arith.constant 0 : index
    %0 = vector.load %arg4[%c0, %c0_0] : memref<8x160xf32, #tpu.memory_space<vmem>>, vector<8x160xf32>
    %c0_1 = arith.constant 0 : index
    %c0_2 = arith.constant 0 : index
    %1 = vector.load %arg1[%c0_1, %c0_2] : memref<8x128xf32, #tpu.memory_space<vmem>>, vector<8x128xf32>
    %c0_3 = arith.constant 0 : index
    %c0_4 = arith.constant 0 : index
    %2 = vector.load %arg2[%c0_3, %c0_4] : memref<432x160xbf16, #tpu.memory_space<vmem>>, vector<128x160xbf16>
    %3 = arith.truncf %1 : vector<8x128xf32> to vector<8x128xbf16>
    %cst = arith.constant dense<0.000000e+00> : vector<8x160xf32>
    %4 = tpu.matmul %3, %2, %cst {dimension_numbers = #tpu.dot_dimension_numbers<[1], [0], [0], [1], [0, 0, 1, 1], [], []>} : vector<8x128xbf16>, vector<128x160xbf16>, vector<8x160xf32> -> vector<8x160xf32>
    %5 = vector.extract_strided_slice %0 {offsets = [0, 0], sizes = [1, 160], strides = [1, 1]} : vector<8x160xf32> to vector<1x160xf32>
    %6 = vector.broadcast %5 : vector<1x160xf32> to vector<8x160xf32>
    %7 = arith.addf %4, %6 : vector<8x160xf32>
    %8 = tpu.iota {dimensions = array<i32: 1>} : vector<8x160xi32>
    %c64_i32 = arith.constant 64 : i32
    %9 = vector.broadcast %c64_i32 : i32 to vector<8x160xi32>
    %10 = arith.cmpi slt, %8, %9 : vector<8x160xi32>
    %11 = math.tanh %7 : vector<8x160xf32>
    %c128_i32 = arith.constant 128 : i32
    %12 = vector.broadcast %c128_i32 : i32 to vector<8x160xi32>
    %13 = arith.cmpi slt, %8, %12 : vector<8x160xi32>
    %cst_5 = arith.constant 0.000000e+00 : f32
    %14 = vector.broadcast %cst_5 : f32 to vector<8x160xf32>
    %15 = arith.maximumf %7, %14 : vector<8x160xf32>
    %16 = arith.select %13, %7, %15 : vector<8x160xi1>, vector<8x160xf32>
    %17 = arith.select %10, %11, %16 : vector<8x160xi1>, vector<8x160xf32>
    %c128 = arith.constant 128 : index
    %c0_6 = arith.constant 0 : index
    %18 = vector.load %arg2[%c128, %c0_6] : memref<432x160xbf16, #tpu.memory_space<vmem>>, vector<160x144xbf16>
    %19 = arith.truncf %17 : vector<8x160xf32> to vector<8x160xbf16>
    %cst_7 = arith.constant dense<0.000000e+00> : vector<8x144xf32>
    %20 = tpu.matmul %19, %18, %cst_7 {dimension_numbers = #tpu.dot_dimension_numbers<[1], [0], [0], [1], [0, 0, 1, 1], [], []>} : vector<8x160xbf16>, vector<160x144xbf16>, vector<8x144xf32> -> vector<8x144xf32>
    %21 = vector.extract_strided_slice %0 {offsets = [1, 0], sizes = [1, 144], strides = [1, 1]} : vector<8x160xf32> to vector<1x144xf32>
    %22 = vector.broadcast %21 : vector<1x144xf32> to vector<8x144xf32>
    %23 = arith.addf %20, %22 : vector<8x144xf32>
    %cst_8 = arith.constant 0.000000e+00 : f32
    %24 = vector.broadcast %cst_8 : f32 to vector<8x144xf32>
    %25 = arith.maximumf %23, %24 : vector<8x144xf32>
    %c288 = arith.constant 288 : index
    %c0_9 = arith.constant 0 : index
    %26 = vector.load %arg2[%c288, %c0_9] : memref<432x160xbf16, #tpu.memory_space<vmem>>, vector<144x128xbf16>
    %27 = arith.truncf %25 : vector<8x144xf32> to vector<8x144xbf16>
    %cst_10 = arith.constant dense<0.000000e+00> : vector<8x128xf32>
    %28 = tpu.matmul %27, %26, %cst_10 {dimension_numbers = #tpu.dot_dimension_numbers<[1], [0], [0], [1], [0, 0, 1, 1], [], []>} : vector<8x144xbf16>, vector<144x128xbf16>, vector<8x128xf32> -> vector<8x128xf32>
    %29 = vector.extract_strided_slice %0 {offsets = [2, 0], sizes = [1, 128], strides = [1, 1]} : vector<8x160xf32> to vector<1x128xf32>
    %30 = vector.broadcast %29 : vector<1x128xf32> to vector<8x128xf32>
    %31 = arith.addf %28, %30 : vector<8x128xf32>
    %32 = tpu.iota {dimensions = array<i32: 1>} : vector<8x128xi32>
    %c64_i32_11 = arith.constant 64 : i32
    %33 = vector.broadcast %c64_i32_11 : i32 to vector<8x128xi32>
    %34 = arith.cmpi slt, %32, %33 : vector<8x128xi32>
    %cst_12 = arith.constant 0.000000e+00 : f32
    %35 = vector.broadcast %cst_12 : f32 to vector<8x128xf32>
    %36 = arith.maximumf %31, %35 : vector<8x128xf32>
    %37 = arith.select %34, %36, %31 : vector<8x128xi1>, vector<8x128xf32>
    %c0_13 = arith.constant 0 : index
    %c0_14 = arith.constant 0 : index
    %38 = vector.load %arg3[%c0_13, %c0_14] : memref<192x128xbf16, #tpu.memory_space<vmem>>, vector<128x32xbf16>
    %39 = arith.truncf %37 : vector<8x128xf32> to vector<8x128xbf16>
    %cst_15 = arith.constant dense<0.000000e+00> : vector<8x32xf32>
    %40 = tpu.matmul %39, %38, %cst_15 {dimension_numbers = #tpu.dot_dimension_numbers<[1], [0], [0], [1], [0, 0, 1, 1], [], []>} : vector<8x128xbf16>, vector<128x32xbf16>, vector<8x32xf32> -> vector<8x32xf32>
    %41 = vector.extract_strided_slice %0 {offsets = [3, 0], sizes = [1, 32], strides = [1, 1]} : vector<8x160xf32> to vector<1x32xf32>
    %42 = vector.broadcast %41 : vector<1x32xf32> to vector<8x32xf32>
    %43 = arith.addf %40, %42 : vector<8x32xf32>
    %cst_16 = arith.constant 0.000000e+00 : f32
    %44 = vector.broadcast %cst_16 : f32 to vector<8x32xf32>
    %45 = arith.maximumf %43, %44 : vector<8x32xf32>
    %c128_17 = arith.constant 128 : index
    %c0_18 = arith.constant 0 : index
    %46 = vector.load %arg3[%c128_17, %c0_18] : memref<192x128xbf16, #tpu.memory_space<vmem>>, vector<32x16xbf16>
    %47 = arith.truncf %45 : vector<8x32xf32> to vector<8x32xbf16>
    %cst_19 = arith.constant dense<0.000000e+00> : vector<8x16xf32>
    %48 = tpu.matmul %47, %46, %cst_19 {dimension_numbers = #tpu.dot_dimension_numbers<[1], [0], [0], [1], [0, 0, 1, 1], [], []>} : vector<8x32xbf16>, vector<32x16xbf16>, vector<8x16xf32> -> vector<8x16xf32>
    %49 = vector.extract_strided_slice %0 {offsets = [4, 0], sizes = [1, 16], strides = [1, 1]} : vector<8x160xf32> to vector<1x16xf32>
    %50 = vector.broadcast %49 : vector<1x16xf32> to vector<8x16xf32>
    %51 = arith.addf %48, %50 : vector<8x16xf32>
    %cst_20 = arith.constant 0.000000e+00 : f32
    %52 = vector.broadcast %cst_20 : f32 to vector<8x16xf32>
    %53 = arith.maximumf %51, %52 : vector<8x16xf32>
    %c160 = arith.constant 160 : index
    %c0_21 = arith.constant 0 : index
    %54 = vector.load %arg3[%c160, %c0_21] : memref<192x128xbf16, #tpu.memory_space<vmem>>, vector<16x8xbf16>
    %55 = arith.truncf %53 : vector<8x16xf32> to vector<8x16xbf16>
    %cst_22 = arith.constant dense<0.000000e+00> : vector<8x8xf32>
    %56 = tpu.matmul %55, %54, %cst_22 {dimension_numbers = #tpu.dot_dimension_numbers<[1], [0], [0], [1], [0, 0, 1, 1], [], []>} : vector<8x16xbf16>, vector<16x8xbf16>, vector<8x8xf32> -> vector<8x8xf32>
    %57 = vector.extract_strided_slice %0 {offsets = [5, 0], sizes = [1, 8], strides = [1, 1]} : vector<8x160xf32> to vector<1x8xf32>
    %58 = vector.broadcast %57 : vector<1x8xf32> to vector<8x8xf32>
    %59 = arith.addf %56, %58 : vector<8x8xf32>
    %c176 = arith.constant 176 : index
    %c0_23 = arith.constant 0 : index
    %60 = vector.load %arg3[%c176, %c0_23] : memref<192x128xbf16, #tpu.memory_space<vmem>>, vector<8x128xbf16>
    %61 = arith.truncf %59 : vector<8x8xf32> to vector<8x8xbf16>
    %cst_24 = arith.constant dense<0.000000e+00> : vector<8x128xf32>
    %62 = tpu.matmul %61, %60, %cst_24 {dimension_numbers = #tpu.dot_dimension_numbers<[1], [0], [0], [1], [0, 0, 1, 1], [], []>} : vector<8x8xbf16>, vector<8x128xbf16>, vector<8x128xf32> -> vector<8x128xf32>
    %63 = vector.extract_strided_slice %0 {offsets = [6, 0], sizes = [1, 128], strides = [1, 1]} : vector<8x160xf32> to vector<1x128xf32>
    %64 = vector.broadcast %63 : vector<1x128xf32> to vector<8x128xf32>
    %65 = arith.addf %62, %64 : vector<8x128xf32>
    %c0_25 = arith.constant 0 : index
    %c0_26 = arith.constant 0 : index
    %66 = vector.load %arg5[%c0_25, %c0_26] : memref<8x128xf32, #tpu.memory_space<vmem>>, vector<8x128xf32>
    tpu.vector_store %arg5[%c0_25, %c0_26], %65 {strides = array<i32>} : memref<8x128xf32, #tpu.memory_space<vmem>>, vector<8x128xf32>,
    return
  }
  func.func @transform_0(%arg0: i32) -> (i32, i32) {
    %c0_i32 = arith.constant 0 : i32
    %c0_i32_0 = arith.constant 0 : i32
    return %arg0, %c0_i32 : i32, i32
  }
  func.func @transform_1(%arg0: i32) -> (i32, i32) {
    %c0_i32 = arith.constant 0 : i32
    %c0_i32_0 = arith.constant 0 : i32
    %c0_i32_1 = arith.constant 0 : i32
    return %c0_i32, %c0_i32_0 : i32, i32
  }
  func.func @transform_2(%arg0: i32) -> (i32, i32) {
    %c0_i32 = arith.constant 0 : i32
    %c0_i32_0 = arith.constant 0 : i32
    %c0_i32_1 = arith.constant 0 : i32
    return %c0_i32, %c0_i32_0 : i32, i32
  }
  func.func @transform_3(%arg0: i32) -> (i32, i32) {
    %c0_i32 = arith.constant 0 : i32
    %c0_i32_0 = arith.constant 0 : i32
    %c0_i32_1 = arith.constant 0 : i32
    return %c0_i32, %c0_i32_0 : i32, i32
  }
  func.func @transform_4(%arg0: i32) -> (i32, i32) {
    %c0_i32 = arith.constant 0 : i32
    %c0_i32_0 = arith.constant 0 : i32
    return %arg0, %c0_i32 : i32, i32
  }
}

</mosaic_0001>

<llo_original>
// kernel: _vlm_forward_jit.1
$region0: #{_vlm_forward_jit.1}
  #allocation0 [shape = 'u32[]', space=smem, size = 0x4, offset = 0x4, fixed_abs, tag = 'smem constant byte address 0x4 - core index']
  #allocation1 [shape = 'u32[144,128]{1,0:T(1,128)}', space=vmem, size = 0x12000, scoped, tag = 'internal scratch']
  %s0 = inlined_call_operand.vmem [shape: f32[8,128], index: 0, kind: input, shape index: {}]
  %s1 = inlined_call_operand.vmem [shape: bf16[432,160], index: 1, kind: input, shape index: {}]
  %s2 = inlined_call_operand.vmem [shape: bf16[192,128], index: 2, kind: input, shape index: {}]
  %s3 = inlined_call_operand.vmem [shape: f32[8,160], index: 3, kind: input, shape index: {}]
  %s4 = inlined_call_operand.vmem [shape: f32[8,128], index: 4, kind: output, shape index: {}]
  %s5 = sld [smem:[#allocation0]]
  $region26: #{_vlm_forward_jit.1} parent=0
    _
  %s7 = ssub.s32 1, %s5
  %s8 = scalar_select 0, %s7, %s5
  // Predicated region
  $region2: #{_vlm_forward_jit.1} parent=0 // pred_check
    _
  $region3: #{_vlm_forward_jit.1} parent=0 // pred_check_branch
    %10 = sbr.rel (0) target = $region5
  $region4: #{_vlm_forward_jit.1} parent=0 // pred_region
    _
  $region5: #{_vlm_forward_jit.1} parent=0 // pred_fallthru
    _
  // Predicated region
  $region6: #{_vlm_forward_jit.1} parent=0 // pred_check
    _
  $region7: #{_vlm_forward_jit.1} parent=0 // pred_check_branch
    %12 = sbr.rel (0) target = $region9
  $region8: #{_vlm_forward_jit.1} parent=0 // pred_region
    _
  $region9: #{_vlm_forward_jit.1} parent=0 // pred_fallthru
    _
  // Predicated region
  $region10: #{_vlm_forward_jit.1} parent=0 // pred_check
    _
  $region11: #{_vlm_forward_jit.1} parent=0 // pred_check_branch
    %14 = sbr.rel (0) target = $region13
  $region12: #{_vlm_forward_jit.1} parent=0 // pred_region
    _
  $region13: #{_vlm_forward_jit.1} parent=0 // pred_fallthru
    _
  // Predicated region
  $region14: #{_vlm_forward_jit.1} parent=0 // pred_check
    _
  $region15: #{_vlm_forward_jit.1} parent=0 // pred_check_branch
    %16 = sbr.rel (0) target = $region17
  $region16: #{_vlm_forward_jit.1} parent=0 // pred_region
    _
  $region17: #{_vlm_forward_jit.1} parent=0 // pred_fallthru
    _
  %v18 = vld [vmem:[%s3] sm:$0xff]
  %v19 = vld [vmem:[%s3 + $0x8] sm:$0xff]
  %v20 = vld [vmem:[%s0] sm:$0xff]
  %v21 = vld [vmem:[%s1] sm:$0xff]
  %v22 = vld [vmem:[%s1 + $0x8] sm:$0xff]
  %v23 = vld [vmem:[%s1 + $0x10] sm:$0xff]
  %v24 = vld [vmem:[%s1 + $0x18] sm:$0xff]
  %v25 = vld [vmem:[%s1 + $0x20] sm:$0xff]
  %v26 = vld [vmem:[%s1 + $0x28] sm:$0xff]
  %v27 = vld [vmem:[%s1 + $0x30] sm:$0xff]
  %v28 = vld [vmem:[%s1 + $0x38] sm:$0xff]
  %v29 = vld [vmem:[%s1 + $0x40] sm:$0xff]
  %v30 = vld [vmem:[%s1 + $0x48] sm:$0xff]
  %v31 = vld [vmem:[%s1 + $0x50] sm:$0xff]
  %v32 = vld [vmem:[%s1 + $0x58] sm:$0xff]
  %v33 = vld [vmem:[%s1 + $0x60] sm:$0xff]
  %v34 = vld [vmem:[%s1 + $0x68] sm:$0xff]
  %v35 = vld [vmem:[%s1 + $0x70] sm:$0xff]
  %v36 = vld [vmem:[%s1 + $0x78] sm:$0xff]
  %v37 = vpack.c.bf16 %v20, %v20
  %v38 = vlaneseq
  %v39 = vshrl.u32 %v38, 7
  %v40 = vsub.s32 0, %v39
  %v41 = vrot.slane %v18, %v40
  %v42 = vlaneseq
  %v43 = vshrl.u32 %v42, 7
  %v44 = vsub.s32 0, %v43
  %v45 = vrot.slane %v19, %v44
  %v62 = vunpack.c.l.b16 %v21
  %v63 = vunpack.c.h.b16 %v21
  %v64 = vunpack.c.l.b16 %v22
  %v65 = vunpack.c.h.b16 %v22
  %v66 = vunpack.c.l.b16 %v23
  %v67 = vunpack.c.h.b16 %v23
  %v68 = vunpack.c.l.b16 %v24
  %v69 = vunpack.c.h.b16 %v24
  %v70 = vunpack.c.l.b16 %v25
  %v71 = vunpack.c.h.b16 %v25
  %v72 = vunpack.c.l.b16 %v26
  %v73 = vunpack.c.h.b16 %v26
  %v74 = vunpack.c.l.b16 %v27
  %v75 = vunpack.c.h.b16 %v27
  %v76 = vunpack.c.l.b16 %v28
  %v77 = vunpack.c.h.b16 %v28
  %v78 = vunpack.c.l.b16 %v29
  %v79 = vunpack.c.h.b16 %v29
  %v80 = vunpack.c.l.b16 %v30
  %v81 = vunpack.c.h.b16 %v30
  %v82 = vunpack.c.l.b16 %v31
  %v83 = vunpack.c.h.b16 %v31
  %v84 = vunpack.c.l.b16 %v32
  %v85 = vunpack.c.h.b16 %v32
  %v86 = vunpack.c.l.b16 %v33
  %v87 = vunpack.c.h.b16 %v33
  %v88 = vunpack.c.l.b16 %v34
  %v89 = vunpack.c.h.b16 %v34
  %v90 = vunpack.c.l.b16 %v35
  %v91 = vunpack.c.h.b16 %v35
  %v92 = vunpack.c.l.b16 %v36
  %v93 = vunpack.c.h.b16 %v36
  %v94 = vpack.c.b16 %v64, %v62
  %v95 = vpack.c.b16 %v65, %v63
  %v96 = vpack.c.b16 %v68, %v66
  %v97 = vpack.c.b16 %v69, %v67
  %v98 = vpack.c.b16 %v72, %v70
  %v99 = vpack.c.b16 %v73, %v71
  %v100 = vpack.c.b16 %v76, %v74
  %v101 = vpack.c.b16 %v77, %v75
  %v102 = vpack.c.b16 %v80, %v78
  %v103 = vpack.c.b16 %v81, %v79
  %v104 = vpack.c.b16 %v84, %v82
  %v105 = vpack.c.b16 %v85, %v83
  %v106 = vpack.c.b16 %v88, %v86
  %v107 = vpack.c.b16 %v89, %v87
  %v108 = vpack.c.b16 %v92, %v90
  %v109 = vpack.c.b16 %v93, %v91
  %126 = vmatprep.subr.bf16.mxu0 %v95
  %127 = vmatpush1.bf16.msra.mxu0 %v94
  %128 = vmatprep.subr.bf16.mxu0 %v97
  %129 = vmatpush1.bf16.msra.mxu0 %v96
  %130 = vmatprep.subr.bf16.mxu0 %v99
  %131 = vmatpush1.bf16.msra.mxu0 %v98
  %132 = vmatprep.subr.bf16.mxu0 %v101
  %133 = vmatpush1.bf16.msra.mxu0 %v100
  %134 = vmatprep.subr.bf16.mxu0 %v103
  %135 = vmatpush1.bf16.msra.mxu0 %v102
  %136 = vmatprep.subr.bf16.mxu0 %v105
  %137 = vmatpush1.bf16.msra.mxu0 %v104
  %138 = vmatprep.subr.bf16.mxu0 %v107
  %139 = vmatpush1.bf16.msra.mxu0 %v106
  %140 = vmatprep.subr.bf16.mxu0 %v109
  %141 = vmatpush1.bf16.msra.mxu0 %v108
  %142 = vmatprep.subr.bf16.mxu0 0
  %143 = vmatpush1.bf16.msra.mxu0 0
  %144 = vmatprep.subr.bf16.mxu0 0
  %145 = vmatpush1.bf16.msra.mxu0 0
  %146 = vmatprep.subr.bf16.mxu0 0
  %147 = vmatpush1.bf16.msra.mxu0 0
  %148 = vmatprep.subr.bf16.mxu0 0
  %149 = vmatpush1.bf16.msra.mxu0 0
  %150 = vmatprep.subr.bf16.mxu0 0
  %151 = vmatpush1.bf16.msra.mxu0 0
  %152 = vmatprep.subr.bf16.mxu0 0
  %153 = vmatpush1.bf16.msra.mxu0 0
  %154 = vmatprep.subr.bf16.mxu0 0
  %155 = vmatpush1.bf16.msra.mxu0 0
  %156 = vmatprep.subr.bf16.mxu0 0
  %157 = vmatpush1.bf16.msra.mxu0 0
  %158 = vmatprep.mubr.bf16.mxu0 0
  %159 = vmatmul.mubr.bf16.gmra.mrb[0].mxu0 %v37
  %v160 = vpop.f32.mrb[0].mxu0
  %v161 = vadd.f32 %v41, %v160
  %v162 = vpop.f32.mrb[0].mxu0
  %v163 = vadd.f32 %v45, %v162
  %v164 = vpop.f32.mrb[0].mxu0
  %v165 = vpop.f32.mrb[0].mxu0
  %166 = vdwg.mxu0
  %v167 = vlaneseq
  %v168 = vand.u32 %v167, 127
  %v169 = vadd.s32 %v168, 128
  %vm170 = vcmp.lt.s32.totalorder %v168, 64
  %vm171 = vcmp.lt.s32.totalorder %v169, 64
  %v172 = vtanh.pop %v161
  %v173 = vtanh.pop %v163
  %vm174 = vcmp.lt.s32.totalorder %v168, 128
  %vm175 = vcmp.lt.s32.totalorder %v169, 128
  %v176 = vmax.f32 %v161, 0.0
  %v177 = vmax.f32 %v163, 0.0
  %v178 = vsel %vm174, %v161, %v176
  %v179 = vsel %vm175, %v163, %v177
  %v180 = vsel %vm170, %v172, %v178
  %v181 = vsel %vm171, %v173, %v179
  %v182 = vld [vmem:[%s1 + $0x80] sm:$0xff]
  %v183 = vld [vmem:[%s1 + $0x88] sm:$0xff]
  %v184 = vld [vmem:[%s1 + $0x90] sm:$0xff]
  %v185 = vld [vmem:[%s1 + $0x98] sm:$0xff]
  %v186 = vld [vmem:[%s1 + $0xa0] sm:$0xff]
  %v187 = vld [vmem:[%s1 + $0xa8] sm:$0xff]
  %v188 = vld [vmem:[%s1 + $0xb0] sm:$0xff]
  %v189 = vld [vmem:[%s1 + $0xb8] sm:$0xff]
  %v190 = vld [vmem:[%s1 + $0xc0] sm:$0xff]
  %v191 = vld [vmem:[%s1 + $0xc8] sm:$0xff]
  %v192 = vld [vmem:[%s1 + $0xd0] sm:$0xff]
  %v193 = vld [vmem:[%s1 + $0xd8] sm:$0xff]
  %v194 = vld [vmem:[%s1 + $0xe0] sm:$0xff]
  %v195 = vld [vmem:[%s1 + $0xe8] sm:$0xff]
  %v196 = vld [vmem:[%s1 + $0xf0] sm:$0xff]
  %v197 = vld [vmem:[%s1 + $0xf8] sm:$0xff]
  %v198 = vld [vmem:[%s1 + $0x100] sm:$0xff]
  %v199 = vld [vmem:[%s1 + $0x108] sm:$0xff]
  %v200 = vld [vmem:[%s1 + $0x110] sm:$0xff]
  %v201 = vld [vmem:[%s1 + $0x118] sm:$0xff]
  %v202 = vpack.c.bf16 %v180, %v180
  %v203 = vpack.c.bf16 %v181, %v181
  %v204 = vlaneseq
  %v205 = vshrl.u32 %v204, 7
  %v206 = vsub.s32 1, %v205
  %v207 = vrot.slane %v18, %v206
  %v208 = vlaneseq
  %v209 = vshrl.u32 %v208, 7
  %v210 = vsub.s32 1, %v209
  %v211 = vrot.slane %v19, %v210
  %v232 = vunpack.c.l.b16 %v182
  %v233 = vunpack.c.h.b16 %v182
  %v234 = vunpack.c.l.b16 %v183
  %v235 = vunpack.c.h.b16 %v183
  %v236 = vunpack.c.l.b16 %v184
  %v237 = vunpack.c.h.b16 %v184
  %v238 = vunpack.c.l.b16 %v185
  %v239 = vunpack.c.h.b16 %v185
  %v240 = vunpack.c.l.b16 %v186
  %v241 = vunpack.c.h.b16 %v186
  %v242 = vunpack.c.l.b16 %v187
  %v243 = vunpack.c.h.b16 %v187
  %v244 = vunpack.c.l.b16 %v188
  %v245 = vunpack.c.h.b16 %v188
  %v246 = vunpack.c.l.b16 %v189
  %v247 = vunpack.c.h.b16 %v189
  %v248 = vunpack.c.l.b16 %v190
  %v249 = vunpack.c.h.b16 %v190
  %v250 = vunpack.c.l.b16 %v191
  %v251 = vunpack.c.h.b16 %v191
  %v252 = vunpack.c.l.b16 %v192
  %v253 = vunpack.c.h.b16 %v192
  %v254 = vunpack.c.l.b16 %v193
  %v255 = vunpack.c.h.b16 %v193
  %v256 = vunpack.c.l.b16 %v194
  %v257 = vunpack.c.h.b16 %v194
  %v258 = vunpack.c.l.b16 %v195
  %v259 = vunpack.c.h.b16 %v195
  %v260 = vunpack.c.l.b16 %v196
  %v261 = vunpack.c.h.b16 %v196
  %v262 = vunpack.c.l.b16 %v197
  %v263 = vunpack.c.h.b16 %v197
  %v264 = vunpack.c.l.b16 %v198
  %v265 = vunpack.c.h.b16 %v198
  %v266 = vunpack.c.l.b16 %v199
  %v267 = vunpack.c.h.b16 %v199
  %v268 = vunpack.c.l.b16 %v200
  %v269 = vunpack.c.h.b16 %v200
  %v270 = vunpack.c.l.b16 %v201
  %v271 = vunpack.c.h.b16 %v201
  %v272 = vpack.c.b16 %v234, %v232
  %v273 = vpack.c.b16 %v235, %v233
  %v274 = vpack.c.b16 %v238, %v236
  %v275 = vpack.c.b16 %v239, %v237
  %v276 = vpack.c.b16 %v242, %v240
  %v277 = vpack.c.b16 %v243, %v241
  %v278 = vpack.c.b16 %v246, %v244
  %v279 = vpack.c.b16 %v247, %v245
  %v280 = vpack.c.b16 %v250, %v248
  %v281 = vpack.c.b16 %v251, %v249
  %v282 = vpack.c.b16 %v254, %v252
  %v283 = vpack.c.b16 %v255, %v253
  %v284 = vpack.c.b16 %v258, %v256
  %v285 = vpack.c.b16 %v259, %v257
  %v286 = vpack.c.b16 %v262, %v260
  %v287 = vpack.c.b16 %v263, %v261
  %v288 = vpack.c.b16 %v266, %v264
  %v289 = vpack.c.b16 %v267, %v265
  %v290 = vpack.c.b16 %v270, %v268
  %v291 = vpack.c.b16 %v271, %v269
  %vm312 = vcmask 261120
  %v314 = vsel %vm312, %v203, 0
  %316 = vmatprep.subr.bf16.mxu0 %v273
  %317 = vmatpush1.bf16.msra.mxu0 %v272
  %318 = vmatprep.subr.bf16.mxu0 %v275
  %319 = vmatpush1.bf16.msra.mxu0 %v274
  %320 = vmatprep.subr.bf16.mxu0 %v277
  %321 = vmatpush1.bf16.msra.mxu0 %v276
  %322 = vmatprep.subr.bf16.mxu0 %v279
  %323 = vmatpush1.bf16.msra.mxu0 %v278
  %324 = vmatprep.subr.bf16.mxu0 %v281
  %325 = vmatpush1.bf16.msra.mxu0 %v280
  %326 = vmatprep.subr.bf16.mxu0 %v283
  %327 = vmatpush1.bf16.msra.mxu0 %v282
  %328 = vmatprep.subr.bf16.mxu0 %v285
  %329 = vmatpush1.bf16.msra.mxu0 %v284
  %330 = vmatprep.subr.bf16.mxu0 %v287
  %331 = vmatpush1.bf16.msra.mxu0 %v286
  %332 = vmatprep.subr.bf16.mxu0 %v289
  %333 = vmatpush1.bf16.msra.mxu0 %v288
  %334 = vmatprep.subr.bf16.mxu0 %v291
  %335 = vmatpush1.bf16.msra.mxu0 %v290
  %336 = vmatprep.subr.bf16.mxu0 0
  %337 = vmatpush1.bf16.msra.mxu0 0
  %338 = vmatprep.subr.bf16.mxu0 0
  %339 = vmatpush1.bf16.msra.mxu0 0
  %340 = vmatprep.subr.bf16.mxu0 0
  %341 = vmatpush1.bf16.msra.mxu0 0
  %342 = vmatprep.subr.bf16.mxu0 0
  %343 = vmatpush1.bf16.msra.mxu0 0
  %344 = vmatprep.subr.bf16.mxu0 0
  %345 = vmatpush1.bf16.msra.mxu0 0
  %346 = vmatprep.subr.bf16.mxu0 0
  %347 = vmatpush1.bf16.msra.mxu0 0
  %348 = vmatprep.mubr.bf16.mxu0 %v314
  %349 = vmatmul.mubr.bf16.gmra.mrb[0].mxu0 %v202
  %v350 = vpop.f32.mrb[0].mxu0
  %v351 = vadd.f32 %v207, %v350
  %v352 = vpop.f32.mrb[0].mxu0
  %v353 = vadd.f32 %v211, %v352
  %v354 = vpop.f32.mrb[0].mxu0
  %v355 = vpop.f32.mrb[0].mxu0
  %356 = vdwg.mxu0
  %v357 = vmax.f32 %v351, 0.0
  %v358 = vmax.f32 %v353, 0.0
  %v359 = vld [vmem:[%s1 + $0x120] sm:$0xf]
  %v360 = vld [vmem:[%s1 + $0x128] sm:$0xf]
  %v361 = vld [vmem:[%s1 + $0x130] sm:$0xf]
  %v362 = vld [vmem:[%s1 + $0x138] sm:$0xf]
  %v363 = vld [vmem:[%s1 + $0x140] sm:$0xf]
  %v364 = vld [vmem:[%s1 + $0x148] sm:$0xf]
  %v365 = vld [vmem:[%s1 + $0x150] sm:$0xf]
  %v366 = vld [vmem:[%s1 + $0x158] sm:$0xf]
  %v367 = vld [vmem:[%s1 + $0x160] sm:$0xf]
  %v368 = vld [vmem:[%s1 + $0x168] sm:$0xf]
  %v369 = vld [vmem:[%s1 + $0x170] sm:$0xf]
  %v370 = vld [vmem:[%s1 + $0x178] sm:$0xf]
  %v371 = vld [vmem:[%s1 + $0x180] sm:$0xf]
  %v372 = vld [vmem:[%s1 + $0x188] sm:$0xf]
  %v373 = vld [vmem:[%s1 + $0x190] sm:$0xf]
  %v374 = vld [vmem:[%s1 + $0x198] sm:$0xf]
  %v375 = vld [vmem:[%s1 + $0x1a0] sm:$0xf]
  %v376 = vld [vmem:[%s1 + $0x1a8] sm:$0xf]
  %v377 = vpack.c.bf16 %v357, %v357
  %v378 = vpack.c.bf16 %v358, %v358
  %v379 = vlaneseq
  %v380 = vshrl.u32 %v379, 7
  %v381 = vsub.s32 2, %v380
  %v382 = vrot.slane %v18, %v381
  %v401 = vunpack.c.l.b16 %v359
  %v402 = vunpack.c.l.b16 %v360
  %v403 = vunpack.c.l.b16 %v361
  %v404 = vunpack.c.l.b16 %v362
  %v405 = vunpack.c.l.b16 %v363
  %v406 = vunpack.c.l.b16 %v364
  %v407 = vunpack.c.l.b16 %v365
  %v408 = vunpack.c.l.b16 %v366
  %v409 = vunpack.c.l.b16 %v367
  %v410 = vunpack.c.l.b16 %v368
  %v411 = vunpack.c.l.b16 %v369
  %v412 = vunpack.c.l.b16 %v370
  %v413 = vunpack.c.l.b16 %v371
  %v414 = vunpack.c.l.b16 %v372
  %v415 = vunpack.c.l.b16 %v373
  %v416 = vunpack.c.l.b16 %v374
  %v417 = vunpack.c.l.b16 %v375
  %v418 = vunpack.c.l.b16 %v376
  %v419 = vpack.c.b16 %v402, %v401
  %v420 = vpack.c.b16 %v404, %v403
  %v421 = vpack.c.b16 %v406, %v405
  %v422 = vpack.c.b16 %v408, %v407
  %v423 = vpack.c.b16 %v410, %v409
  %v424 = vpack.c.b16 %v412, %v411
  %v425 = vpack.c.b16 %v414, %v413
  %v426 = vpack.c.b16 %v416, %v415
  %v427 = vpack.c.b16 %v418, %v417
  %vm437 = vcmask 130048
  %v439 = vsel %vm437, %v378, 0
  %441 = vmatprep.subr.bf16.mxu0 0
  %442 = vmatpush1.bf16.msra.mxu0 %v419
  %443 = vmatprep.subr.bf16.mxu0 0
  %444 = vmatpush1.bf16.msra.mxu0 %v420
  %445 = vmatprep.subr.bf16.mxu0 0
  %446 = vmatpush1.bf16.msra.mxu0 %v421
  %447 = vmatprep.subr.bf16.mxu0 0
  %448 = vmatpush1.bf16.msra.mxu0 %v422
  %449 = vmatprep.subr.bf16.mxu0 0
  %450 = vmatpush1.bf16.msra.mxu0 %v423
  %451 = vmatprep.subr.bf16.mxu0 0
  %452 = vmatpush1.bf16.msra.mxu0 %v424
  %453 = vmatprep.subr.bf16.mxu0 0
  %454 = vmatpush1.bf16.msra.mxu0 %v425
  %455 = vmatprep.subr.bf16.mxu0 0
  %456 = vmatpush1.bf16.msra.mxu0 %v426
  %457 = vmatprep.subr.bf16.mxu0 0
  %458 = vmatpush1.bf16.msra.mxu0 %v427
  %459 = vmatprep.subr.bf16.mxu0 0
  %460 = vmatpush1.bf16.msra.mxu0 0
  %461 = vmatprep.subr.bf16.mxu0 0
  %462 = vmatpush1.bf16.msra.mxu0 0
  %463 = vmatprep.subr.bf16.mxu0 0
  %464 = vmatpush1.bf16.msra.mxu0 0
  %465 = vmatprep.subr.bf16.mxu0 0
  %466 = vmatpush1.bf16.msra.mxu0 0
  %467 = vmatprep.subr.bf16.mxu0 0
  %468 = vmatpush1.bf16.msra.mxu0 0
  %469 = vmatprep.subr.bf16.mxu0 0
  %470 = vmatpush1.bf16.msra.mxu0 0
  %471 = vmatprep.subr.bf16.mxu0 0
  %472 = vmatpush1.bf16.msra.mxu0 0
  %473 = vmatprep.mubr.bf16.mxu0 %v439
  %474 = vmatmul.mubr.bf16.gmra.mrb[0].mxu0 %v377
  %v475 = vpop.f32.mrb[0].mxu0
  %v476 = vadd.f32 %v382, %v475
  %v477 = vpop.f32.mrb[0].mxu0
  %v478 = vpop.f32.mrb[0].mxu0
  %v479 = vpop.f32.mrb[0].mxu0
  %480 = vdwg.mxu0
  %v481 = vmax.f32 %v476, 0.0
  %v482 = vsel %vm170, %v481, %v476
  %v483 = vld [vmem:[%s2] sm:$0xf]
  %v484 = vld [vmem:[%s2 + $0x4] sm:$0xf]
  %v485 = vld [vmem:[%s2 + $0x8] sm:$0xf]
  %v486 = vld [vmem:[%s2 + $0xc] sm:$0xf]
  %v487 = vld [vmem:[%s2 + $0x10] sm:$0xf]
  %v488 = vld [vmem:[%s2 + $0x14] sm:$0xf]
  %v489 = vld [vmem:[%s2 + $0x18] sm:$0xf]
  %v490 = vld [vmem:[%s2 + $0x1c] sm:$0xf]
  %v491 = vld [vmem:[%s2 + $0x20] sm:$0xf]
  %v492 = vld [vmem:[%s2 + $0x24] sm:$0xf]
  %v493 = vld [vmem:[%s2 + $0x28] sm:$0xf]
  %v494 = vld [vmem:[%s2 + $0x2c] sm:$0xf]
  %v495 = vld [vmem:[%s2 + $0x30] sm:$0xf]
  %v496 = vld [vmem:[%s2 + $0x34] sm:$0xf]
  %v497 = vld [vmem:[%s2 + $0x38] sm:$0xf]
  %v498 = vld [vmem:[%s2 + $0x3c] sm:$0xf]
  %v499 = vpack.c.bf16 %v482, %v482
  %v500 = vlaneseq
  %v501 = vshrl.u32 %v500, 7
  %v502 = vsub.s32 3, %v501
  %v503 = vrot.slane %v18, %v502
  %v520 = vunpack.c.l.b16 %v483
  %v521 = vunpack.c.l.b16 %v484
  %v522 = vunpack.c.l.b16 %v485
  %v523 = vunpack.c.l.b16 %v486
  %v524 = vunpack.c.l.b16 %v487
  %v525 = vunpack.c.l.b16 %v488
  %v526 = vunpack.c.l.b16 %v489
  %v527 = vunpack.c.l.b16 %v490
  %v528 = vunpack.c.l.b16 %v491
  %v529 = vunpack.c.l.b16 %v492
  %v530 = vunpack.c.l.b16 %v493
  %v531 = vunpack.c.l.b16 %v494
  %v532 = vunpack.c.l.b16 %v495
  %v533 = vunpack.c.l.b16 %v496
  %v534 = vunpack.c.l.b16 %v497
  %v535 = vunpack.c.l.b16 %v498
  %v536 = vpack.c.b16 %v521, %v520
  %v537 = vpack.c.b16 %v523, %v522
  %v538 = vpack.c.b16 %v525, %v524
  %v539 = vpack.c.b16 %v527, %v526
  %v540 = vpack.c.b16 %v529, %v528
  %v541 = vpack.c.b16 %v531, %v530
  %v542 = vpack.c.b16 %v533, %v532
  %v543 = vpack.c.b16 %v535, %v534
  %552 = vmatprep.subr.bf16.mxu0 0
  %553 = vmatpush1.bf16.msra.mxu0 %v536
  %554 = vmatprep.subr.bf16.mxu0 0
  %555 = vmatpush1.bf16.msra.mxu0 %v537
  %556 = vmatprep.subr.bf16.mxu0 0
  %557 = vmatpush1.bf16.msra.mxu0 %v538
  %558 = vmatprep.subr.bf16.mxu0 0
  %559 = vmatpush1.bf16.msra.mxu0 %v539
  %560 = vmatprep.subr.bf16.mxu0 0
  %561 = vmatpush1.bf16.msra.mxu0 %v540
  %562 = vmatprep.subr.bf16.mxu0 0
  %563 = vmatpush1.bf16.msra.mxu0 %v541
  %564 = vmatprep.subr.bf16.mxu0 0
  %565 = vmatpush1.bf16.msra.mxu0 %v542
  %566 = vmatprep.subr.bf16.mxu0 0
  %567 = vmatpush1.bf16.msra.mxu0 %v543
  %568 = vmatprep.subr.bf16.mxu0 0
  %569 = vmatpush1.bf16.msra.mxu0 0
  %570 = vmatprep.subr.bf16.mxu0 0
  %571 = vmatpush1.bf16.msra.mxu0 0
  %572 = vmatprep.subr.bf16.mxu0 0
  %573 = vmatpush1.bf16.msra.mxu0 0
  %574 = vmatprep.subr.bf16.mxu0 0
  %575 = vmatpush1.bf16.msra.mxu0 0
  %576 = vmatprep.subr.bf16.mxu0 0
  %577 = vmatpush1.bf16.msra.mxu0 0
  %578 = vmatprep.subr.bf16.mxu0 0
  %579 = vmatpush1.bf16.msra.mxu0 0
  %580 = vmatprep.subr.bf16.mxu0 0
  %581 = vmatpush1.bf16.msra.mxu0 0
  %582 = vmatprep.subr.bf16.mxu0 0
  %583 = vmatpush1.bf16.msra.mxu0 0
  %584 = vmatprep.mubr.bf16.mxu0 0
  %585 = vmatmul.mubr.bf16.gmra.mrb[0].mxu0 %v499
  %v586 = vpop.f32.mrb[0].mxu0
  %v587 = vadd.f32 %v503, %v586
  %v588 = vpop.f32.mrb[0].mxu0
  %v589 = vpop.f32.mrb[0].mxu0
  %v590 = vpop.f32.mrb[0].mxu0
  %591 = vdwg.mxu0
  %v592 = vmax.f32 %v587, 0.0
  %v593 = vld [vmem:[%s2 + $0x40] sm:$0xf]
  %v594 = vld [vmem:[%s2 + $0x44] sm:$0xf]
  %v595 = vld [vmem:[%s2 + $0x48] sm:$0xf]
  %v596 = vld [vmem:[%s2 + $0x4c] sm:$0xf]
  %v597 = vpack.c.bf16 %v592, %v592
  %v598 = vlaneseq
  %v599 = vshrl.u32 %v598, 7
  %v600 = vsub.s32 4, %v599
  %v601 = vrot.slane %v18, %v600
  %v606 = vunpack.c.l.b16 %v593
  %v607 = vunpack.c.l.b16 %v594
  %v608 = vunpack.c.l.b16 %v595
  %v609 = vunpack.c.l.b16 %v596
  %v610 = vpack.c.b16 %v607, %v606
  %v611 = vpack.c.b16 %v609, %v608
  %v615 = vsel %vm312, %v597, 0
  %617 = vmatprep.subr.bf16.mxu0 0
  %618 = vmatpush1.bf16.msra.mxu0 %v610
  %619 = vmatprep.subr.bf16.mxu0 0
  %620 = vmatpush1.bf16.msra.mxu0 %v611
  %621 = vmatprep.subr.bf16.mxu0 0
  %622 = vmatpush1.bf16.msra.mxu0 0
  %623 = vmatprep.subr.bf16.mxu0 0
  %624 = vmatpush1.bf16.msra.mxu0 0
  %625 = vmatprep.subr.bf16.mxu0 0
  %626 = vmatpush1.bf16.msra.mxu0 0
  %627 = vmatprep.subr.bf16.mxu0 0
  %628 = vmatpush1.bf16.msra.mxu0 0
  %629 = vmatprep.subr.bf16.mxu0 0
  %630 = vmatpush1.bf16.msra.mxu0 0
  %631 = vmatprep.subr.bf16.mxu0 0
  %632 = vmatpush1.bf16.msra.mxu0 0
  %633 = vmatprep.subr.bf16.mxu0 0
  %634 = vmatpush1.bf16.msra.mxu0 0
  %635 = vmatprep.subr.bf16.mxu0 0
  %636 = vmatpush1.bf16.msra.mxu0 0
  %637 = vmatprep.subr.bf16.mxu0 0
  %638 = vmatpush1.bf16.msra.mxu0 0
  %639 = vmatprep.subr.bf16.mxu0 0
  %640 = vmatpush1.bf16.msra.mxu0 0
  %641 = vmatprep.subr.bf16.mxu0 0
  %642 = vmatpush1.bf16.msra.mxu0 0
  %643 = vmatprep.subr.bf16.mxu0 0
  %644 = vmatpush1.bf16.msra.mxu0 0
  %645 = vmatprep.subr.bf16.mxu0 0
  %646 = vmatpush1.bf16.msra.mxu0 0
  %647 = vmatprep.subr.bf16.mxu0 0
  %648 = vmatpush1.bf16.msra.mxu0 0
  %649 = vmatprep.mubr.bf16.mxu0 0
  %650 = vmatmul.mubr.bf16.gmra.mrb[0].mxu0 %v615
  %v651 = vpop.f32.mrb[0].mxu0
  %v652 = vadd.f32 %v601, %v651
  %v653 = vpop.f32.mrb[0].mxu0
  %v654 = vpop.f32.mrb[0].mxu0
  %v655 = vpop.f32.mrb[0].mxu0
  %656 = vdwg.mxu0
  %v657 = vmax.f32 %v652, 0.0
  %v658 = vld [vmem:[%s2 + $0x50] sm:$0xf]
  %v659 = vld [vmem:[%s2 + $0x54] sm:$0xf]
  %v660 = vpack.c.bf16 %v657, %v657
  %v661 = vlaneseq
  %v662 = vshrl.u32 %v661, 7
  %v663 = vsub.s32 5, %v662
  %v664 = vrot.slane %v18, %v663
  %v667 = vunpack.c.l.b16 %v658
  %v668 = vunpack.c.l.b16 %v659
  %v669 = vpack.c.b16 %v668, %v667
  %v672 = vsel %vm437, %v660, 0
  %674 = vmatprep.subr.bf16.mxu0 0
  %675 = vmatpush1.bf16.msra.mxu0 %v669
  %676 = vmatprep.subr.bf16.mxu0 0
  %677 = vmatpush1.bf16.msra.mxu0 0
  %678 = vmatprep.subr.bf16.mxu0 0
  %679 = vmatpush1.bf16.msra.mxu0 0
  %680 = vmatprep.subr.bf16.mxu0 0
  %681 = vmatpush1.bf16.msra.mxu0 0
  %682 = vmatprep.subr.bf16.mxu0 0
  %683 = vmatpush1.bf16.msra.mxu0 0
  %684 = vmatprep.subr.bf16.mxu0 0
  %685 = vmatpush1.bf16.msra.mxu0 0
  %686 = vmatprep.subr.bf16.mxu0 0
  %687 = vmatpush1.bf16.msra.mxu0 0
  %688 = vmatprep.subr.bf16.mxu0 0
  %689 = vmatpush1.bf16.msra.mxu0 0
  %690 = vmatprep.subr.bf16.mxu0 0
  %691 = vmatpush1.bf16.msra.mxu0 0
  %692 = vmatprep.subr.bf16.mxu0 0
  %693 = vmatpush1.bf16.msra.mxu0 0
  %694 = vmatprep.subr.bf16.mxu0 0
  %695 = vmatpush1.bf16.msra.mxu0 0
  %696 = vmatprep.subr.bf16.mxu0 0
  %697 = vmatpush1.bf16.msra.mxu0 0
  %698 = vmatprep.subr.bf16.mxu0 0
  %699 = vmatpush1.bf16.msra.mxu0 0
  %700 = vmatprep.subr.bf16.mxu0 0
  %701 = vmatpush1.bf16.msra.mxu0 0
  %702 = vmatprep.subr.bf16.mxu0 0
  %703 = vmatpush1.bf16.msra.mxu0 0
  %704 = vmatprep.subr.bf16.mxu0 0
  %705 = vmatpush1.bf16.msra.mxu0 0
  %706 = vmatprep.mubr.bf16.mxu0 0
  %707 = vmatmul.mubr.bf16.gmra.mrb[0].mxu0 %v672
  %v708 = vpop.f32.mrb[0].mxu0
  %v709 = vadd.f32 %v664, %v708
  %v710 = vpop.f32.mrb[0].mxu0
  %v711 = vpop.f32.mrb[0].mxu0
  %v712 = vpop.f32.mrb[0].mxu0
  %713 = vdwg.mxu0
  %v714 = vld [vmem:[%s2 + $0x58] sm:$0xf]
  %v715 = vpack.c.bf16 %v709, %v709
  %v716 = vlaneseq
  %v717 = vshrl.u32 %v716, 7
  %v718 = vsub.s32 6, %v717
  %v719 = vrot.slane %v18, %v718
  %vm720 = vcmask 64512
  %v722 = vsel %vm720, %v715, 0
  %vm724 = vcmask 1043456
  %v726 = vsel %vm724, %v714, 0
  %728 = vmatprep.subr.bf16.mxu0 0
  %729 = vmatpush1.bf16.msra.mxu0 %v726
  %730 = vmatprep.subr.bf16.mxu0 0
  %731 = vmatpush1.bf16.msra.mxu0 0
  %732 = vmatprep.subr.bf16.mxu0 0
  %733 = vmatpush1.bf16.msra.mxu0 0
  %734 = vmatprep.subr.bf16.mxu0 0
  %735 = vmatpush1.bf16.msra.mxu0 0
  %736 = vmatprep.subr.bf16.mxu0 0
  %737 = vmatpush1.bf16.msra.mxu0 0
  %738 = vmatprep.subr.bf16.mxu0 0
  %739 = vmatpush1.bf16.msra.mxu0 0
  %740 = vmatprep.subr.bf16.mxu0 0
  %741 = vmatpush1.bf16.msra.mxu0 0
  %742 = vmatprep.subr.bf16.mxu0 0
  %743 = vmatpush1.bf16.msra.mxu0 0
  %744 = vmatprep.subr.bf16.mxu0 0
  %745 = vmatpush1.bf16.msra.mxu0 0
  %746 = vmatprep.subr.bf16.mxu0 0
  %747 = vmatpush1.bf16.msra.mxu0 0
  %748 = vmatprep.subr.bf16.mxu0 0
  %749 = vmatpush1.bf16.msra.mxu0 0
  %750 = vmatprep.subr.bf16.mxu0 0
  %751 = vmatpush1.bf16.msra.mxu0 0
  %752 = vmatprep.subr.bf16.mxu0 0
  %753 = vmatpush1.bf16.msra.mxu0 0
  %754 = vmatprep.subr.bf16.mxu0 0
  %755 = vmatpush1.bf16.msra.mxu0 0
  %756 = vmatprep.subr.bf16.mxu0 0
  %757 = vmatpush1.bf16.msra.mxu0 0
  %758 = vmatprep.subr.bf16.mxu0 0
  %759 = vmatpush1.bf16.msra.mxu0 0
  %760 = vmatprep.mubr.bf16.mxu0 0
  %761 = vmatmul.mubr.bf16.gmra.mrb[0].mxu0 %v722
  %v762 = vpop.f32.mrb[0].mxu0
  %v763 = vadd.f32 %v719, %v762
  %v764 = vpop.f32.mrb[0].mxu0
  %v765 = vpop.f32.mrb[0].mxu0
  %v766 = vpop.f32.mrb[0].mxu0
  %767 = vdwg.mxu0
  %768 = vst [vmem:[%s4] sm:$0xff] %v763
  // Predicated region
  $region18: #{_vlm_forward_jit.1} parent=0 // pred_check
    _
  $region19: #{_vlm_forward_jit.1} parent=0 // pred_check_branch
    %770 = sbr.rel (0) target = $region21
  $region20: #{_vlm_forward_jit.1} parent=0 // pred_region
    _
  $region21: #{_vlm_forward_jit.1} parent=0 // pred_fallthru
    _
  // Predicated region
  $region22: #{_vlm_forward_jit.1} parent=0 // pred_check
    _
  $region23: #{_vlm_forward_jit.1} parent=0 // pred_check_branch
    %772 = sbr.rel (0) target = $region25
  $region24: #{_vlm_forward_jit.1} parent=0 // pred_region
    _
  $region25: #{_vlm_forward_jit.1} parent=0 // pred_fallthru
    _

</llo_original>
